<compile_context>
chip_gen: v7x
topology: tpu7x:2x2x1
jax: 0.10.0
libtpu: 0.0.40
codegen_flags: <defaults>
</compile_context>

<pallas_src>
import functools
import math

import jax
import jax.numpy as jnp
from jax.experimental import pallas as pl
from jax.experimental.pallas import tpu as pltpu


def _round_up(x, m):
    return ((x + m - 1) // m) * m


# ---------------------------------------------------------------------------
# Kernel 1: node linear, no bias:  v_lin = v @ W_lin^T  (weight pre-transposed)
# ---------------------------------------------------------------------------
def _lin_kernel(v_ref, w_ref, o_ref):
    o_ref[...] = jnp.dot(
        v_ref[...], w_ref[...], preferred_element_type=jnp.float32
    ).astype(o_ref.dtype)


def linear_nobias(v, w_t, *, tile_n=1024):
    n, h = v.shape
    f = w_t.shape[1]
    tile = min(tile_n, _round_up(n, 8))
    grid = (pl.cdiv(n, tile),)
    return pl.pallas_call(
        _lin_kernel,
        out_shape=jax.ShapeDtypeStruct((n, f), jnp.float32),
        grid_spec=pltpu.PrefetchScalarGridSpec(
            num_scalar_prefetch=0,
            grid=grid,
            in_specs=[
                pl.BlockSpec((tile, h), lambda i: (i, 0)),  # node rows
                pl.BlockSpec((h, f), lambda i: (0, 0)),     # full weight
            ],
            out_specs=pl.BlockSpec((tile, f), lambda i: (i, 0)),
        ),
        compiler_params=pltpu.CompilerParams(
            dimension_semantics=("parallel",)),
    )(v, w_t)


# ---------------------------------------------------------------------------
# Kernel 2: fused edge update.
#   W = (softplus(emb @ W1 + b1) - log 2) @ W2 + b2
#   C = 0.5 * (cos(dist * pi / cutoff) + 1)
#   e = v_j * W * C
# ---------------------------------------------------------------------------
def _edge_kernel(dist_ref, emb_ref, vj_ref, w1_ref, b1_ref, w2_ref, b2_ref,
                 out_ref, *, cutoff, shift):
    # MLP layer 1 (MXU) + shifted softplus (numerically stable, EUP/VPU).
    h = jnp.dot(emb_ref[...], w1_ref[...],
                preferred_element_type=jnp.float32) + b1_ref[...]
    sp = jnp.maximum(h, 0.0) + jnp.log1p(jnp.exp(-jnp.abs(h)))
    h = sp - shift
    # MLP layer 2 (MXU).
    w = jnp.dot(h, w2_ref[...],
                preferred_element_type=jnp.float32) + b2_ref[...]
    # Cosine cutoff weighting.
    c = 0.5 * (jnp.cos(dist_ref[...] * (math.pi / cutoff)) + 1.0)   # (TE, 1)
    # Edge features.
    out_ref[...] = (vj_ref[...] * w * c).astype(out_ref.dtype)


def update_e_forward(params, v, dist, dist_emb, edge_index,
                     *, tile_e=1024, tile_n=1024):
    """Pallas forward of update_e. Returns (E, num_filters) float32."""
    j = edge_index[0]

    # Node linear (no bias), then gather the source-node rows per edge.
    v_lin = linear_nobias(v.astype(jnp.float32), params.lin_w_t, tile_n=tile_n)
    # TODO(synk): the v_lin[j] row gather is plain XLA `take`; an in-kernel
    # gather would require pl.ANY HBM refs + manual per-tile DMA.
    v_j = jnp.take(v_lin, j, axis=0)

    e_count, g = dist_emb.shape
    f = params.w1_t.shape[1]
    dist_col = jnp.reshape(dist, (e_count, 1)).astype(jnp.float32)

    tile = min(tile_e, _round_up(e_count, 8))
    grid = (pl.cdiv(e_count, tile),)

    kernel = functools.partial(
        _edge_kernel, cutoff=float(params.cutoff), shift=float(math.log(2.0)))

    return pl.pallas_call(
        kernel,
        out_shape=jax.ShapeDtypeStruct((e_count, f), jnp.float32),
        grid_spec=pltpu.PrefetchScalarGridSpec(
            num_scalar_prefetch=0,
            grid=grid,
            in_specs=[
                pl.BlockSpec((tile, 1), lambda i: (i, 0)),   # dist column
                pl.BlockSpec((tile, g), lambda i: (i, 0)),   # dist_emb tile
                pl.BlockSpec((tile, f), lambda i: (i, 0)),   # gathered v_lin[j]
                pl.BlockSpec((g, f), lambda i: (0, 0)),      # W1^T (resident)
                pl.BlockSpec((1, f), lambda i: (0, 0)),      # b1
                pl.BlockSpec((f, f), lambda i: (0, 0)),      # W2^T (resident)
                pl.BlockSpec((1, f), lambda i: (0, 0)),      # b2
            ],
            out_specs=pl.BlockSpec((tile, f), lambda i: (i, 0)),
        ),
        compiler_params=pltpu.CompilerParams(
            dimension_semantics=("parallel",)),
    )(dist_col, dist_emb.astype(jnp.float32), v_j,
      params.w1_t, params.b1, params.w2_t, params.b2)


class UpdateEParams:
    """Deterministic parameter container mirroring update_e.__init__."""

    def __init__(self, key, hidden_channels, num_filters, num_gaussians,
                 cutoff):
        self.cutoff = float(cutoff)
        k1, k2, k3 = jax.random.split(key, 3)

        def xavier(k, fan_in, fan_out):
            limit = math.sqrt(6.0 / (fan_in + fan_out))
            return jax.random.uniform(k, (fan_in, fan_out), jnp.float32,
                                      -limit, limit)

        # torch.nn.Linear stores weight as (out, in); store transposed (in, out)
        # so kernels compute x @ W directly.
        self.lin_w_t = xavier(k1, hidden_channels, num_filters)   # (H, F)
        self.w1_t = xavier(k2, num_gaussians, num_filters)        # (G, F)
        self.b1 = jnp.zeros((1, num_filters), jnp.float32)
        self.w2_t = xavier(k3, num_filters, num_filters)          # (F, F)
        self.b2 = jnp.zeros((1, num_filters), jnp.float32)

    def __call__(self, v, dist, dist_emb, edge_index):
        return update_e_forward(self, v, dist, dist_emb, edge_index)


if __name__ == "__main__":
    key = jax.random.PRNGKey(0)
    kp, kv, kd, ke = jax.random.split(key, 4)

    hidden_channels, num_filters, num_gaussians = 32, 64, 50
    cutoff = 5.0
    num_nodes, num_edges = 16, 64

    params = UpdateEParams(kp, hidden_channels, num_filters, num_gaussians,
                           cutoff)

    v = jax.random.normal(kv, (num_nodes, hidden_channels), jnp.float32)
    dist = jax.random.uniform(kd, (num_edges,), jnp.float32, 0.0, cutoff)
    # Gaussian-smearing distance embedding (same math as SchNet's `emb`).
    offset = jnp.linspace(0.0, cutoff, num_gaussians, dtype=jnp.float32)
    coeff = -0.5 / float(offset[1] - offset[0]) ** 2
    dist_emb = jnp.exp(coeff * (dist[:, None] - offset[None, :]) ** 2)
    edge_index = jax.random.randint(ke, (2, num_edges), 0, num_nodes,
                                    dtype=jnp.int32)

    e = params(v, dist, dist_emb, edge_index)
    e = jax.block_until_ready(e)

    # Pure-JAX reference (same math as the PyTorch forward).
    j = edge_index[0]
    C = 0.5 * (jnp.cos(dist * math.pi / cutoff) + 1.0)
    h = dist_emb @ params.w1_t + params.b1
    h = jax.nn.softplus(h) - math.log(2.0)
    W = (h @ params.w2_t + params.b2) * C[:, None]
    ref = (v @ params.lin_w_t)[j] * W

    assert e.shape == (num_edges, num_filters)
    assert jnp.allclose(e, ref, atol=1e-4, rtol=1e-4), float(
        jnp.max(jnp.abs(e - ref)))

    print("KERNEL_OK")
</pallas_src>

<mosaic_0001>
module attributes {stable_mosaic.version = 11 : i64} {
  func.func @_lin_kernel(%arg0: i32, %arg1: memref<16x32xf32, #tpu.memory_space<vmem>>, %arg2: memref<32x64xf32, #tpu.memory_space<vmem>>, %arg3: memref<16x64xf32, #tpu.memory_space<vmem>>) attributes {dimension_semantics = [#tpu.dimension_semantics<parallel>], iteration_bounds = array<i64: 1>, scalar_prefetch = 0 : i64, scratch_operands = 0 : i64, tpu.core_type = #tpu.core_type<tc>, window_params = [{transform_indices = @transform_0, window_bounds = array<i64: 16, 32>}, {pipeline_mode = #tpu.pipeline_mode<synchronous>, transform_indices = @transform_1, window_bounds = array<i64: 32, 64>}, {transform_indices = @transform_2, window_bounds = array<i64: 16, 64>}]} {
    %c0 = arith.constant 0 : index
    %c0_0 = arith.constant 0 : index
    %0 = vector.load %arg1[%c0, %c0_0] : memref<16x32xf32, #tpu.memory_space<vmem>>, vector<16x32xf32>
    %c0_1 = arith.constant 0 : index
    %c0_2 = arith.constant 0 : index
    %1 = vector.load %arg2[%c0_1, %c0_2] : memref<32x64xf32, #tpu.memory_space<vmem>>, vector<32x64xf32>
    %cst = arith.constant dense<0.000000e+00> : vector<16x64xf32>
    %2 = tpu.matmul %0, %1, %cst {dimension_numbers = #tpu.dot_dimension_numbers<[1], [0], [0], [1], [0, 0, 1, 1], [], []>} : vector<16x32xf32>, vector<32x64xf32>, vector<16x64xf32> -> vector<16x64xf32>
    %c0_3 = arith.constant 0 : index
    %c0_4 = arith.constant 0 : index
    %3 = vector.load %arg3[%c0_3, %c0_4] : memref<16x64xf32, #tpu.memory_space<vmem>>, vector<16x64xf32>
    tpu.vector_store %arg3[%c0_3, %c0_4], %2 {strides = array<i32>} : memref<16x64xf32, #tpu.memory_space<vmem>>, vector<16x64xf32>,
    return
  }
  func.func @transform_0(%arg0: i32) -> (i32, i32) {
    %c0_i32 = arith.constant 0 : i32
    %c0_i32_0 = arith.constant 0 : i32
    return %arg0, %c0_i32 : i32, i32
  }
  func.func @transform_1(%arg0: i32) -> (i32, i32) {
    %c0_i32 = arith.constant 0 : i32
    %c0_i32_0 = arith.constant 0 : i32
    %c0_i32_1 = arith.constant 0 : i32
    return %c0_i32, %c0_i32_0 : i32, i32
  }
  func.func @transform_2(%arg0: i32) -> (i32, i32) {
    %c0_i32 = arith.constant 0 : i32
    %c0_i32_0 = arith.constant 0 : i32
    return %arg0, %c0_i32 : i32, i32
  }
}

</mosaic_0001>

<llo_original>
// kernel: tpu_custom_call.1
$region0: #{tpu_custom_call.1}
  #allocation0 [shape = 'u32[]', space=smem, size = 0x4, offset = 0x4, fixed_abs, tag = 'smem constant byte address 0x4 - core index']
  #allocation1 [shape = 'u32[144,128]{1,0:T(1,128)}', space=vmem, size = 0x12000, scoped, tag = 'internal scratch']
  %s0 = inlined_call_operand.hbm [shape: f32[16,32], index: 0, kind: input, shape index: {}]
  %s1 = inlined_call_operand.hbm [shape: f32[32,64], index: 1, kind: input, shape index: {}]
  %s2 = inlined_call_operand.hbm [shape: f32[16,64], index: 2, kind: output, shape index: {}]
  %s3 = sld [smem:[#allocation0]]
  $region26: #{tpu_custom_call.1} parent=0
    _
  %s5 = ssub.s32 1, %s3
  %s6 = scalar_select 0, %s5, %s3
  $region1: #{tpu_custom_call.1} parent=0
    #allocation2 [shape = 'u8[8192]{0}', space=vmem, size = 0x2000, scoped, tag = 'input window, operand 0, single buffered']
    #allocation3 [shape = 's32[1]{0}', space=sflag, size = 0x4, scoped, tag = 'scoped memory for tpu_custom_call.1']
    #allocation4 [shape = 's32[1]{0}', space=sflag, size = 0x4, scoped, tag = 'scoped memory for tpu_custom_call.1']
    #allocation5 [shape = 'u8[16384]{0}', space=vmem, size = 0x4000, scoped, tag = 'input window, operand 1, single buffered']
    #allocation6 [shape = 's32[1]{0}', space=sflag, size = 0x4, scoped, tag = 'scoped memory for tpu_custom_call.1']
    #allocation7 [shape = 'u8[8192]{0}', space=vmem, size = 0x2000, scoped, tag = 'output window, operand 0, single buffered']
    %7 = vsyncpa [#allocation3], 0
    %8 = vsyncpa [#allocation6], 0
    %9 = vsyncpa [#allocation4], 0
    // Predicated region
    $region2: #{tpu_custom_call.1} parent=1 // pred_check
      _
    $region3: #{tpu_custom_call.1} parent=1 // pred_check_branch
      %11 = sbr.rel (0) target = $region5
    $region4: #{tpu_custom_call.1} parent=1 // pred_region
      %s13 = ssub.s32 256, 256
      %14 = vsyncadd [#allocation3], %s13
      %s15 = sshll.u32 [#allocation2], 4
      %s16 = int_to_ptr.vmem [resolvable:$true] %s15
      %21 = dma.hbm_to_vmem [thread:$0]  %s0, 256, %s16, [#allocation3], 128, 128, 8
    $region5: #{tpu_custom_call.1} parent=1 // pred_fallthru
      _
    // Predicated region
    $region6: #{tpu_custom_call.1} parent=1 // pred_check
      _
    $region7: #{tpu_custom_call.1} parent=1 // pred_check_branch
      %23 = sbr.rel (0) target = $region9
    $region8: #{tpu_custom_call.1} parent=1 // pred_region
      %s25 = ssub.s32 512, 512
      %26 = vsyncadd [#allocation6], %s25
      %s27 = sshll.u32 [#allocation5], 4
      %s28 = int_to_ptr.vmem [resolvable:$true] %s27
      %33 = dma.hbm_to_vmem [thread:$0]  %s1, 512, %s28, [#allocation6], 128, 128, 8
    $region9: #{tpu_custom_call.1} parent=1 // pred_fallthru
      _
    // Predicated region
    $region10: #{tpu_custom_call.1} parent=1 // pred_check
      _
    $region11: #{tpu_custom_call.1} parent=1 // pred_check_branch
      %35 = sbr.rel (0) target = $region13
    $region12: #{tpu_custom_call.1} parent=1 // pred_region
      %36 = dma.done [#allocation3], 256
    $region13: #{tpu_custom_call.1} parent=1 // pred_fallthru
      _
    // Predicated region
    $region14: #{tpu_custom_call.1} parent=1 // pred_check
      _
    $region15: #{tpu_custom_call.1} parent=1 // pred_check_branch
      %38 = sbr.rel (0) target = $region17
    $region16: #{tpu_custom_call.1} parent=1 // pred_region
      %39 = dma.done [#allocation6], 512
    $region17: #{tpu_custom_call.1} parent=1 // pred_fallthru
      _
    %v40 = vld [vmem:[#allocation2] sm:$0xff]
    %v41 = vld [vmem:[#allocation2 + $0x8] sm:$0xff]
    %v42 = vld [vmem:[#allocation5] sm:$0xff]
    %v43 = vld [vmem:[#allocation5 + $0x8] sm:$0xff]
    %v44 = vld [vmem:[#allocation5 + $0x10] sm:$0xff]
    %v45 = vld [vmem:[#allocation5 + $0x18] sm:$0xff]
    %vm46 = vcmask 261120
    %v48 = vsel %vm46, %v40, 0
    %v51 = vsel %vm46, %v41, 0
    %53 = vmatprep.subr.mxu0 0.0
    %54 = vmatpush1.msra.mxu0 %v42
    %55 = vmatprep.subr.mxu0 0.0
    %56 = vmatpush1.msra.mxu0 %v43
    %57 = vmatprep.subr.mxu0 0.0
    %58 = vmatpush1.msra.mxu0 %v44
    %59 = vmatprep.subr.mxu0 0.0
    %60 = vmatpush1.msra.mxu0 %v45
    %61 = vmatprep.subr.mxu0 0.0
    %62 = vmatpush1.msra.mxu0 0.0
    %63 = vmatprep.subr.mxu0 0.0
    %64 = vmatpush1.msra.mxu0 0.0
    %65 = vmatprep.subr.mxu0 0.0
    %66 = vmatpush1.msra.mxu0 0.0
    %67 = vmatprep.subr.mxu0 0.0
    %68 = vmatpush1.msra.mxu0 0.0
    %69 = vmatprep.subr.mxu0 0.0
    %70 = vmatpush1.msra.mxu0 0.0
    %71 = vmatprep.subr.mxu0 0.0
    %72 = vmatpush1.msra.mxu0 0.0
    %73 = vmatprep.subr.mxu0 0.0
    %74 = vmatpush1.msra.mxu0 0.0
    %75 = vmatprep.subr.mxu0 0.0
    %76 = vmatpush1.msra.mxu0 0.0
    %77 = vmatprep.subr.mxu0 0.0
    %78 = vmatpush1.msra.mxu0 0.0
    %79 = vmatprep.subr.mxu0 0.0
    %80 = vmatpush1.msra.mxu0 0.0
    %81 = vmatprep.subr.mxu0 0.0
    %82 = vmatpush1.msra.mxu0 0.0
    %83 = vmatprep.subr.mxu0 0.0
    %84 = vmatpush1.msra.mxu0 0.0
    %85 = vmatprep.subr.mxu0 0.0
    %86 = vmatpush1.msra.mxu0 0.0
    %87 = vmatprep.subr.mxu0 0.0
    %88 = vmatpush1.msra.mxu0 0.0
    %89 = vmatprep.subr.mxu0 0.0
    %90 = vmatpush1.msra.mxu0 0.0
    %91 = vmatprep.subr.mxu0 0.0
    %92 = vmatpush1.msra.mxu0 0.0
    %93 = vmatprep.subr.mxu0 0.0
    %94 = vmatpush1.msra.mxu0 0.0
    %95 = vmatprep.subr.mxu0 0.0
    %96 = vmatpush1.msra.mxu0 0.0
    %97 = vmatprep.subr.mxu0 0.0
    %98 = vmatpush1.msra.mxu0 0.0
    %99 = vmatprep.subr.mxu0 0.0
    %100 = vmatpush1.msra.mxu0 0.0
    %101 = vmatprep.subr.mxu0 0.0
    %102 = vmatpush1.msra.mxu0 0.0
    %103 = vmatprep.subr.mxu0 0.0
    %104 = vmatpush1.msra.mxu0 0.0
    %105 = vmatprep.subr.mxu0 0.0
    %106 = vmatpush1.msra.mxu0 0.0
    %107 = vmatprep.subr.mxu0 0.0
    %108 = vmatpush1.msra.mxu0 0.0
    %109 = vmatprep.subr.mxu0 0.0
    %110 = vmatpush1.msra.mxu0 0.0
    %111 = vmatprep.subr.mxu0 0.0
    %112 = vmatpush1.msra.mxu0 0.0
    %113 = vmatprep.subr.mxu0 0.0
    %114 = vmatpush1.msra.mxu0 0.0
    %115 = vmatprep.subr.mxu0 0.0
    %116 = vmatpush1.msra.mxu0 0.0
    %117 = vmatprep.mubr.f32.mxu0 0.0
    %118 = vmatmul.mubr.f32.gmra.mrb[0].mxu0 %v48
    %v119 = vpop.f32.mrb[0].mxu0
    %v120 = vadd.f32 0.0, %v119
    %v121 = vpop.f32.mrb[0].mxu0
    %122 = vmatprep.mubr.f32.mxu0 0.0
    %123 = vmatmul.mubr.f32.gmra.mrb[0].mxu0 %v51
    %v124 = vpop.f32.mrb[0].mxu0
    %v125 = vadd.f32 0.0, %v124
    %v126 = vpop.f32.mrb[0].mxu0
    %127 = vdwg.mxu0
    %vm128 = vcmask 523264
    %129 = vst.msk [vmem:[#allocation7] sm:$0xff] %vm128, %v120
    %130 = vst.msk [vmem:[#allocation7 + $0x8] sm:$0xff] %vm128, %v125
    // Predicated region
    $region18: #{tpu_custom_call.1} parent=1 // pred_check
      _
    $region19: #{tpu_custom_call.1} parent=1 // pred_check_branch
      %132 = sbr.rel (0) target = $region21
    $region20: #{tpu_custom_call.1} parent=1 // pred_region
      %s134 = ssub.s32 256, 256
      %135 = vsyncadd [#allocation4], %s134
      %s136 = sshll.u32 [#allocation7], 4
      %s137 = int_to_ptr.vmem [resolvable:$true] %s136
      %142 = dma.vmem_to_hbm [thread:$0]  %s137, 256, %s2, [#allocation4], 128, 128, 8
    $region21: #{tpu_custom_call.1} parent=1 // pred_fallthru
      _
    // Predicated region
    $region22: #{tpu_custom_call.1} parent=1 // pred_check
      _
    $region23: #{tpu_custom_call.1} parent=1 // pred_check_branch
      %144 = sbr.rel (0) target = $region25
    $region24: #{tpu_custom_call.1} parent=1 // pred_region
      %145 = dma.done [#allocation4], 256
    $region25: #{tpu_custom_call.1} parent=1 // pred_fallthru
      _
    %146 = vsyncpa [#allocation3], 1
    %147 = vsyncpa [#allocation6], 1
    %148 = vsyncpa [#allocation4], 1

</llo_original>
